<compile_context>
chip_gen: v7x
topology: tpu7x:2x2x1
jax: 0.10.0
libtpu: 0.0.40
codegen_flags: <defaults>
</compile_context>

<pallas_src>
import numpy as np
import jax
import jax.numpy as jnp
from jax.experimental import pallas as pl
from jax.experimental.pallas import tpu as pltpu


def _round_up(n, m):
    return (n + m - 1) // m * m


# ----------------------------------------------------------------------------
# Pallas kernel: fused 3-layer MLP backbone over one batch tile.
#   x_ref : (TILE_B, FDp)  compute dtype (bf16)
#   w1    : (FDp, H1p) bf16   b1: (1, H1p) f32
#   w2    : (H1p, H2p) bf16   b2: (1, H2p) f32
#   w3    : (H2p, 1)   f32    b3: (1, 1)   f32
#   o_ref : (1, TILE_B) f32   (lane-dense: batch along lanes)
# ----------------------------------------------------------------------------
def _mlp_backbone_kernel(x_ref, w1_ref, b1_ref, w2_ref, b2_ref, w3_ref, b3_ref,
                         o_ref):
    x = x_ref[...]                                                  # (TB, FDp)
    h1 = jnp.dot(x, w1_ref[...], preferred_element_type=jnp.float32)
    h1 = jnp.maximum(h1 + b1_ref[...], 0.0)                         # (TB, H1p) f32
    h2 = jnp.dot(h1.astype(w2_ref.dtype), w2_ref[...],
                 preferred_element_type=jnp.float32)
    h2 = jnp.maximum(h2 + b2_ref[...], 0.0)                         # (TB, H2p) f32
    # Final (H2 -> 1) layer on VPU/XLU instead of a 1-column MXU pass,
    # producing a lane-dense (1, TILE_B) row directly.
    h2t = h2.T                                                      # (H2p, TB)
    logit = jnp.sum(h2t * w3_ref[...], axis=0, keepdims=True) + b3_ref[...]
    o_ref[...] = jax.nn.sigmoid(logit)                              # (1, TB)


def mlp_backbone(x_flat, bb, *, max_tile_b=512):
    """Fused Pallas backbone.  x_flat: (B, FDp) compute dtype.  Returns (B, 1) f32."""
    B, FDp = x_flat.shape
    H1p = bb["w1"].shape[1]
    H2p = bb["w2"].shape[1]

    # Adaptive batch tile: multiple of 128, large enough to amortize per-step
    # overhead, small enough to keep double-buffered VMEM comfortable.
    tile_b = min(max_tile_b, _round_up(max(B, 1), 128))
    B_pad = _round_up(max(B, 1), tile_b)
    if B_pad != B:
        x_flat = jnp.pad(x_flat, ((0, B_pad - B), (0, 0)))
    num_tiles = B_pad // tile_b

    def wspec(shape):  # whole-array, VMEM-resident (constant block index)
        return pl.BlockSpec(shape, lambda i: (0, 0))

    itemsize = lambda a: a.size * a.dtype.itemsize
    cost = pl.CostEstimate(
        flops=2 * B_pad * (FDp * H1p + H1p * H2p + H2p),
        transcendentals=B_pad,  # sigmoid
        bytes_accessed=(itemsize(x_flat) + itemsize(bb["w1"]) + itemsize(bb["w2"])
                        + itemsize(bb["w3"]) + B_pad * 4),
    )

    out = pl.pallas_call(
        _mlp_backbone_kernel,
        out_shape=jax.ShapeDtypeStruct((1, B_pad), jnp.float32),
        grid=(num_tiles,),
        in_specs=[
            pl.BlockSpec((tile_b, FDp), lambda i: (i, 0)),   # batch-tiled input stream
            wspec((FDp, H1p)),                               # w1 (resident)
            wspec((1, H1p)),                                 # b1
            wspec((H1p, H2p)),                               # w2
            wspec((1, H2p)),                                 # b2
            wspec((H2p, 1)),                                 # w3 column (f32)
            wspec((1, 1)),                                   # b3
        ],
        out_specs=pl.BlockSpec((1, tile_b), lambda i: (0, i)),  # lane-dense output
        compiler_params=pltpu.CompilerParams(
            dimension_semantics=("parallel",)),              # megacore / 2-TC sharding
        cost_estimate=cost,
    )(x_flat, bb["w1"], bb["b1"], bb["w2"], bb["b2"], bb["w3"], bb["b3"])

    return out[0, :B].reshape(B, 1)


# ----------------------------------------------------------------------------
# Parameter init: logical (unpadded, torch-matching) params + padded/cast
# backbone params for the Pallas kernel.
# ----------------------------------------------------------------------------
def init_params(key, unique_values, emb_dim, h1, h2, *,
                compute_dtype=jnp.bfloat16, pad_to=128):
    n_fields = len(unique_values)
    fd = emb_dim * n_fields
    total_vocab = int(sum(unique_values))
    k_emb, k1, k2, k3 = jax.random.split(key, 4)

    # torch.nn.init.normal_(std=0.01) on the embedding table
    emb = 0.01 * jax.random.normal(k_emb, (total_vocab, emb_dim), jnp.float32)
    w1 = jax.random.normal(k1, (fd, h1), jnp.float32) / np.sqrt(fd)
    w2 = jax.random.normal(k2, (h1, h2), jnp.float32) / np.sqrt(h1)
    w3 = jax.random.normal(k3, (h2, 1), jnp.float32) / np.sqrt(h2)

    params = {
        # bf16 storage halves HBM traffic of the embedding gather (v6e/v7x).
        "embedding": emb.astype(compute_dtype),
        "w1": w1, "b1": jnp.zeros((1, h1), jnp.float32),
        "w2": w2, "b2": jnp.zeros((1, h2), jnp.float32),
        "w3": w3, "b3": jnp.zeros((1, 1), jnp.float32),
    }
    offsets = jnp.asarray(np.array((0, *np.cumsum(unique_values)[:-1]),
                                   dtype=np.int32))

    # Zero-padded + dtype-cast backbone weights (padding is exact for MLP+ReLU).
    fdp, h1p, h2p = (_round_up(d, pad_to) for d in (fd, h1, h2))
    bb = {
        "w1": jnp.pad(w1, ((0, fdp - fd), (0, h1p - h1))).astype(compute_dtype),
        "b1": jnp.pad(params["b1"], ((0, 0), (0, h1p - h1))),
        "w2": jnp.pad(w2, ((0, h1p - h1), (0, h2p - h2))).astype(compute_dtype),
        "b2": jnp.pad(params["b2"], ((0, 0), (0, h2p - h2))),
        "w3": jnp.pad(w3, ((0, h2p - h2), (0, 0))),   # f32 column for VPU epilogue
        "b3": params["b3"],
        "fd": fd, "fdp": fdp,
    }
    return params, bb, offsets


# ----------------------------------------------------------------------------
# BaseModel forward (JAX glue + Pallas hot path)
# ----------------------------------------------------------------------------
def base_model_forward(params, bb, offsets, x, current_epoch=0, current_step=0):
    """x: (B, F) int32 per-field categorical indices."""
    del current_epoch, current_step  # only routed to fs in the original module
    # raw_x = x.clone().detach()  -> only consumed by fs (identity here)
    shifted = x + offsets[None, :]                         # (B, F)
    # Embedding lookup (data-dependent gather) kept in JAX glue; XLA fuses the
    # gather + reshape + pad into one HBM pass.
    # TODO(synk): fuse this gather into the kernel (PrefetchScalarGridSpec with
    # the shifted indices + per-tile make_async_copy from an HBM-resident table)
    # to remove the extra (B,F,D) HBM round trip at production sizes.
    emb = jnp.take(params["embedding"], shifted, axis=0)   # (B, F, D) bf16
    emb = emb  # es(emb)                                   -- identity plugin
    emb = emb  # fs(emb, epoch, step, raw_data=raw_x)      -- identity plugin
    B = emb.shape[0]
    x_flat = emb.reshape(B, -1)                            # (B, F*D)
    if bb["fdp"] != bb["fd"]:
        x_flat = jnp.pad(x_flat, ((0, 0), (0, bb["fdp"] - bb["fd"])))
    return mlp_backbone(x_flat, bb)                        # (B, 1) f32


# ----------------------------------------------------------------------------
# Pure-JAX reference (same bf16-storage / f32-accumulation math, unpadded)
# ----------------------------------------------------------------------------
def reference_forward(params, offsets, x, compute_dtype=jnp.bfloat16):
    emb = jnp.take(params["embedding"], x + offsets[None, :], axis=0)
    h = emb.reshape(emb.shape[0], -1).astype(compute_dtype)
    h1 = jnp.dot(h, params["w1"].astype(compute_dtype),
                 preferred_element_type=jnp.float32) + params["b1"]
    h1 = jnp.maximum(h1, 0.0)
    h2 = jnp.dot(h1.astype(compute_dtype), params["w2"].astype(compute_dtype),
                 preferred_element_type=jnp.float32) + params["b2"]
    h2 = jnp.maximum(h2, 0.0)
    logit = jnp.dot(h2, params["w3"]) + params["b3"]
    return jax.nn.sigmoid(logit)


if __name__ == "__main__":
    # Small synthetic config: 4 categorical fields, embedding_dim=8.
    unique_values = [10, 20, 15, 5]
    emb_dim = 8
    h1, h2 = 32, 16
    batch = 8

    key = jax.random.PRNGKey(0)
    k_params, k_data = jax.random.split(key)
    params, bb, offsets = init_params(k_params, unique_values, emb_dim, h1, h2)

    # Per-field indices in [0, unique_values[f])
    maxvals = jnp.asarray(unique_values, dtype=jnp.int32)
    u = jax.random.uniform(k_data, (batch, len(unique_values)))
    x = (u * maxvals[None, :]).astype(jnp.int32)           # (B, F)

    out = base_model_forward(params, bb, offsets, x, current_epoch=0,
                             current_step=0)
    out = jax.block_until_ready(out)

    ref = reference_forward(params, offsets, x)
    assert out.shape == (batch, 1), out.shape
    np.testing.assert_allclose(np.asarray(out), np.asarray(ref),
                               rtol=1e-3, atol=1e-3)
    print("KERNEL_OK")
</pallas_src>

<mosaic_0001>
module attributes {stable_mosaic.version = 11 : i64} {
  func.func @_mlp_backbone_kernel(%arg0: i32, %arg1: memref<128x128xbf16, #tpu.memory_space<vmem>>, %arg2: memref<128x128xbf16, #tpu.memory_space<vmem>>, %arg3: memref<1x128xf32, #tpu.memory_space<vmem>>, %arg4: memref<128x128xbf16, #tpu.memory_space<vmem>>, %arg5: memref<1x128xf32, #tpu.memory_space<vmem>>, %arg6: memref<128x1xf32, #tpu.memory_space<vmem>>, %arg7: memref<1x1xf32, #tpu.memory_space<vmem>>, %arg8: memref<1x128xf32, #tpu.memory_space<vmem>>) attributes {dimension_semantics = [#tpu.dimension_semantics<parallel>], iteration_bounds = array<i64: 1>, scalar_prefetch = 0 : i64, scratch_operands = 0 : i64, tpu.core_type = #tpu.core_type<tc>, window_params = [{transform_indices = @transform_0, window_bounds = array<i64: 128, 128>}, {pipeline_mode = #tpu.pipeline_mode<synchronous>, transform_indices = @transform_1, window_bounds = array<i64: 128, 128>}, {pipeline_mode = #tpu.pipeline_mode<synchronous>, transform_indices = @transform_2, window_bounds = array<i64: 1, 128>}, {pipeline_mode = #tpu.pipeline_mode<synchronous>, transform_indices = @transform_3, window_bounds = array<i64: 128, 128>}, {pipeline_mode = #tpu.pipeline_mode<synchronous>, transform_indices = @transform_4, window_bounds = array<i64: 1, 128>}, {pipeline_mode = #tpu.pipeline_mode<synchronous>, transform_indices = @transform_5, window_bounds = array<i64: 128, 1>}, {pipeline_mode = #tpu.pipeline_mode<synchronous>, transform_indices = @transform_6, window_bounds = array<i64: 1, 1>}, {transform_indices = @transform_7, window_bounds = array<i64: 1, 128>}]} {
    %c0 = arith.constant 0 : index
    %c0_0 = arith.constant 0 : index
    %0 = vector.load %arg1[%c0, %c0_0] : memref<128x128xbf16, #tpu.memory_space<vmem>>, vector<128x128xbf16>
    %c0_1 = arith.constant 0 : index
    %c0_2 = arith.constant 0 : index
    %1 = vector.load %arg2[%c0_1, %c0_2] : memref<128x128xbf16, #tpu.memory_space<vmem>>, vector<128x128xbf16>
    %cst = arith.constant dense<0.000000e+00> : vector<128x128xf32>
    %2 = tpu.matmul %0, %1, %cst {dimension_numbers = #tpu.dot_dimension_numbers<[1], [0], [0], [1], [0, 0, 1, 1], [], []>} : vector<128x128xbf16>, vector<128x128xbf16>, vector<128x128xf32> -> vector<128x128xf32>
    %c0_3 = arith.constant 0 : index
    %c0_4 = arith.constant 0 : index
    %3 = vector.load %arg3[%c0_3, %c0_4] : memref<1x128xf32, #tpu.memory_space<vmem>>, vector<1x128xf32>
    %4 = vector.broadcast %3 : vector<1x128xf32> to vector<128x128xf32>
    %5 = arith.addf %2, %4 : vector<128x128xf32>
    %cst_5 = arith.constant 0.000000e+00 : f32
    %6 = vector.broadcast %cst_5 : f32 to vector<128x128xf32>
    %7 = arith.maximumf %5, %6 : vector<128x128xf32>
    %8 = arith.truncf %7 : vector<128x128xf32> to vector<128x128xbf16>
    %c0_6 = arith.constant 0 : index
    %c0_7 = arith.constant 0 : index
    %9 = vector.load %arg4[%c0_6, %c0_7] : memref<128x128xbf16, #tpu.memory_space<vmem>>, vector<128x128xbf16>
    %cst_8 = arith.constant dense<0.000000e+00> : vector<128x128xf32>
    %10 = tpu.matmul %8, %9, %cst_8 {dimension_numbers = #tpu.dot_dimension_numbers<[1], [0], [0], [1], [0, 0, 1, 1], [], []>} : vector<128x128xbf16>, vector<128x128xbf16>, vector<128x128xf32> -> vector<128x128xf32>
    %c0_9 = arith.constant 0 : index
    %c0_10 = arith.constant 0 : index
    %11 = vector.load %arg5[%c0_9, %c0_10] : memref<1x128xf32, #tpu.memory_space<vmem>>, vector<1x128xf32>
    %12 = vector.broadcast %11 : vector<1x128xf32> to vector<128x128xf32>
    %13 = arith.addf %10, %12 : vector<128x128xf32>
    %cst_11 = arith.constant 0.000000e+00 : f32
    %14 = vector.broadcast %cst_11 : f32 to vector<128x128xf32>
    %15 = arith.maximumf %13, %14 : vector<128x128xf32>
    %16 = tpu.transpose %15, [1, 0] : vector<128x128xf32> -> vector<128x128xf32>
    %c0_12 = arith.constant 0 : index
    %c0_13 = arith.constant 0 : index
    %17 = vector.load %arg6[%c0_12, %c0_13] : memref<128x1xf32, #tpu.memory_space<vmem>>, vector<128x1xf32>
    %18 = vector.broadcast %17 : vector<128x1xf32> to vector<128x128xf32>
    %19 = arith.mulf %16, %18 : vector<128x128xf32>
    %cst_14 = arith.constant dense<0.000000e+00> : vector<128xf32>
    %20 = vector.multi_reduction <add>, %19, %cst_14 [0] : vector<128x128xf32> to vector<128xf32>
    %21 = vector.shape_cast %20 : vector<128xf32> to vector<1x128xf32>
    %c0_15 = arith.constant 0 : index
    %c0_16 = arith.constant 0 : index
    %22 = vector.load %arg7[%c0_15, %c0_16] : memref<1x1xf32, #tpu.memory_space<vmem>>, vector<1x1xf32>
    %23 = vector.broadcast %22 : vector<1x1xf32> to vector<1x128xf32>
    %24 = arith.addf %21, %23 : vector<1x128xf32>
    %25 = arith.negf %24 : vector<1x128xf32>
    %26 = math.exp %25 : vector<1x128xf32>
    %cst_17 = arith.constant 1.000000e+00 : f32
    %27 = vector.broadcast %cst_17 : f32 to vector<1x128xf32>
    %28 = arith.addf %27, %26 : vector<1x128xf32>
    %29 = arith.divf %27, %28 : vector<1x128xf32>
    %c0_18 = arith.constant 0 : index
    %c0_19 = arith.constant 0 : index
    %30 = vector.load %arg8[%c0_18, %c0_19] : memref<1x128xf32, #tpu.memory_space<vmem>>, vector<1x128xf32>
    tpu.vector_store %arg8[%c0_18, %c0_19], %29 {strides = array<i32>} : memref<1x128xf32, #tpu.memory_space<vmem>>, vector<1x128xf32>,
    return
  }
  func.func @transform_0(%arg0: i32) -> (i32, i32) {
    %c0_i32 = arith.constant 0 : i32
    %c0_i32_0 = arith.constant 0 : i32
    return %arg0, %c0_i32 : i32, i32
  }
  func.func @transform_1(%arg0: i32) -> (i32, i32) {
    %c0_i32 = arith.constant 0 : i32
    %c0_i32_0 = arith.constant 0 : i32
    %c0_i32_1 = arith.constant 0 : i32
    return %c0_i32, %c0_i32_0 : i32, i32
  }
  func.func @transform_2(%arg0: i32) -> (i32, i32) {
    %c0_i32 = arith.constant 0 : i32
    %c0_i32_0 = arith.constant 0 : i32
    %c0_i32_1 = arith.constant 0 : i32
    return %c0_i32, %c0_i32_0 : i32, i32
  }
  func.func @transform_3(%arg0: i32) -> (i32, i32) {
    %c0_i32 = arith.constant 0 : i32
    %c0_i32_0 = arith.constant 0 : i32
    %c0_i32_1 = arith.constant 0 : i32
    return %c0_i32, %c0_i32_0 : i32, i32
  }
  func.func @transform_4(%arg0: i32) -> (i32, i32) {
    %c0_i32 = arith.constant 0 : i32
    %c0_i32_0 = arith.constant 0 : i32
    %c0_i32_1 = arith.constant 0 : i32
    return %c0_i32, %c0_i32_0 : i32, i32
  }
  func.func @transform_5(%arg0: i32) -> (i32, i32) {
    %c0_i32 = arith.constant 0 : i32
    %c0_i32_0 = arith.constant 0 : i32
    %c0_i32_1 = arith.constant 0 : i32
    return %c0_i32, %c0_i32_0 : i32, i32
  }
  func.func @transform_6(%arg0: i32) -> (i32, i32) {
    %c0_i32 = arith.constant 0 : i32
    %c0_i32_0 = arith.constant 0 : i32
    %c0_i32_1 = arith.constant 0 : i32
    return %c0_i32, %c0_i32_0 : i32, i32
  }
  func.func @transform_7(%arg0: i32) -> (i32, i32) {
    %c0_i32 = arith.constant 0 : i32
    %c0_i32_0 = arith.constant 0 : i32
    return %c0_i32, %arg0 : i32, i32
  }
}

</mosaic_0001>

<llo_original>
// kernel: tpu_custom_call.1
$region0: #{tpu_custom_call.1}
  #allocation0 [shape = 'u32[]', space=smem, size = 0x4, offset = 0x4, fixed_abs, tag = 'smem constant byte address 0x4 - core index']
  #allocation1 [shape = 'u32[144,128]{1,0:T(1,128)}', space=vmem, size = 0x12000, scoped, tag = 'internal scratch']
  #allocation2 [shape = 'f32[1,1]{1,0:T(1,128)S(1)}', space=vmem, size = 0x200, scoped, tag = 'scoped memory for tpu_custom_call.1']
  %s0 = inlined_call_operand.vmem [shape: bf16[128,128], index: 0, kind: input, shape index: {}]
  %s1 = inlined_call_operand.vmem [shape: bf16[128,128], index: 1, kind: input, shape index: {}]
  %s2 = inlined_call_operand.vmem [shape: f32[1,128], index: 2, kind: input, shape index: {}]
  %s3 = inlined_call_operand.hbm [shape: bf16[128,128], index: 3, kind: input, shape index: {}]
  %s4 = inlined_call_operand.vmem [shape: f32[1,128], index: 4, kind: input, shape index: {}]
  %s5 = inlined_call_operand.vmem [shape: f32[128,1], index: 5, kind: input, shape index: {}]
  %s6 = inlined_call_operand.<no memory space> [shape: f32[1,1], index: 6, kind: input, shape index: {}]
  %s7 = inlined_call_operand.hbm [shape: f32[1,128], index: 7, kind: output, shape index: {}]
  %s8 = sld [smem:[#allocation0]]
  $region42: #{tpu_custom_call.1} parent=0
    _
  %s10 = ssub.s32 1, %s8
  %s11 = scalar_select 0, %s10, %s8
  %v12 = vstv %s6
  %13 = vst [vmem:[#allocation2] sm:$0x1] %v12
  $region1: #{tpu_custom_call.1} parent=0
    #allocation3 [shape = 'u8[32768]{0}', space=vmem, size = 0x8000, scoped, tag = 'input window, operand 3, single buffered']
    #allocation4 [shape = 's32[1]{0}', space=sflag, size = 0x4, scoped, tag = 'scoped memory for tpu_custom_call.1']
    #allocation5 [shape = 's32[1]{0}', space=sflag, size = 0x4, scoped, tag = 'scoped memory for tpu_custom_call.1']
    #allocation6 [shape = 'u8[512]{0}', space=vmem, size = 0x400, scoped, tag = 'output window, operand 0, single buffered']
    %14 = vsyncpa [#allocation4], 0
    %15 = vsyncpa [#allocation5], 0
    // Predicated region
    $region2: #{tpu_custom_call.1} parent=1 // pred_check
      _
    $region3: #{tpu_custom_call.1} parent=1 // pred_check_branch
      %17 = sbr.rel (0) target = $region5
    $region4: #{tpu_custom_call.1} parent=1 // pred_region
      _
    $region5: #{tpu_custom_call.1} parent=1 // pred_fallthru
      _
    // Predicated region
    $region6: #{tpu_custom_call.1} parent=1 // pred_check
      _
    $region7: #{tpu_custom_call.1} parent=1 // pred_check_branch
      %19 = sbr.rel (0) target = $region9
    $region8: #{tpu_custom_call.1} parent=1 // pred_region
      _
    $region9: #{tpu_custom_call.1} parent=1 // pred_fallthru
      _
    // Predicated region
    $region10: #{tpu_custom_call.1} parent=1 // pred_check
      _
    $region11: #{tpu_custom_call.1} parent=1 // pred_check_branch
      %21 = sbr.rel (0) target = $region13
    $region12: #{tpu_custom_call.1} parent=1 // pred_region
      _
    $region13: #{tpu_custom_call.1} parent=1 // pred_fallthru
      _
    // Predicated region
    $region14: #{tpu_custom_call.1} parent=1 // pred_check
      _
    $region15: #{tpu_custom_call.1} parent=1 // pred_check_branch
      %23 = sbr.rel (0) target = $region17
    $region16: #{tpu_custom_call.1} parent=1 // pred_region
      %s25 = ssub.s32 1024, 1024
      %26 = vsyncadd [#allocation4], %s25
      %s27 = sshll.u32 [#allocation3], 4
      %s28 = int_to_ptr.vmem [resolvable:$true] %s27
      %33 = dma.hbm_to_vmem [thread:$0]  %s3, 1024, %s28, [#allocation4], 64, 64, 4
    $region17: #{tpu_custom_call.1} parent=1 // pred_fallthru
      _
    // Predicated region
    $region18: #{tpu_custom_call.1} parent=1 // pred_check
      _
    $region19: #{tpu_custom_call.1} parent=1 // pred_check_branch
      %35 = sbr.rel (0) target = $region21
    $region20: #{tpu_custom_call.1} parent=1 // pred_region
      _
    $region21: #{tpu_custom_call.1} parent=1 // pred_fallthru
      _
    // Predicated region
    $region22: #{tpu_custom_call.1} parent=1 // pred_check
      _
    $region23: #{tpu_custom_call.1} parent=1 // pred_check_branch
      %37 = sbr.rel (0) target = $region25
    $region24: #{tpu_custom_call.1} parent=1 // pred_region
      _
    $region25: #{tpu_custom_call.1} parent=1 // pred_fallthru
      _
    // Predicated region
    $region26: #{tpu_custom_call.1} parent=1 // pred_check
      _
    $region27: #{tpu_custom_call.1} parent=1 // pred_check_branch
      %39 = sbr.rel (0) target = $region29
    $region28: #{tpu_custom_call.1} parent=1 // pred_region
      _
    $region29: #{tpu_custom_call.1} parent=1 // pred_fallthru
      _
    // Predicated region
    $region30: #{tpu_custom_call.1} parent=1 // pred_check
      _
    $region31: #{tpu_custom_call.1} parent=1 // pred_check_branch
      %41 = sbr.rel (0) target = $region33
    $region32: #{tpu_custom_call.1} parent=1 // pred_region
      %42 = dma.done [#allocation4], 1024
    $region33: #{tpu_custom_call.1} parent=1 // pred_fallthru
      _
    %v44 = vld [vmem:[%s0] sm:$0xf]
    %v45 = vld [vmem:[%s0 + $0x4] sm:$0xf]
    %v46 = vld [vmem:[%s0 + $0x8] sm:$0xf]
    %v47 = vld [vmem:[%s0 + $0xc] sm:$0xf]
    %v48 = vld [vmem:[%s0 + $0x10] sm:$0xf]
    %v49 = vld [vmem:[%s0 + $0x14] sm:$0xf]
    %v50 = vld [vmem:[%s0 + $0x18] sm:$0xf]
    %v51 = vld [vmem:[%s0 + $0x1c] sm:$0xf]
    %v52 = vld [vmem:[%s0 + $0x20] sm:$0xf]
    %v53 = vld [vmem:[%s0 + $0x24] sm:$0xf]
    %v54 = vld [vmem:[%s0 + $0x28] sm:$0xf]
    %v55 = vld [vmem:[%s0 + $0x2c] sm:$0xf]
    %v56 = vld [vmem:[%s0 + $0x30] sm:$0xf]
    %v57 = vld [vmem:[%s0 + $0x34] sm:$0xf]
    %v58 = vld [vmem:[%s0 + $0x38] sm:$0xf]
    %v59 = vld [vmem:[%s0 + $0x3c] sm:$0xf]
    %v60 = vld [vmem:[%s1] sm:$0xf]
    %v61 = vld [vmem:[%s1 + $0x4] sm:$0xf]
    %v62 = vld [vmem:[%s1 + $0x8] sm:$0xf]
    %v63 = vld [vmem:[%s1 + $0xc] sm:$0xf]
    %v64 = vld [vmem:[%s1 + $0x10] sm:$0xf]
    %v65 = vld [vmem:[%s1 + $0x14] sm:$0xf]
    %v66 = vld [vmem:[%s1 + $0x18] sm:$0xf]
    %v67 = vld [vmem:[%s1 + $0x1c] sm:$0xf]
    %v68 = vld [vmem:[%s1 + $0x20] sm:$0xf]
    %v69 = vld [vmem:[%s1 + $0x24] sm:$0xf]
    %v70 = vld [vmem:[%s1 + $0x28] sm:$0xf]
    %v71 = vld [vmem:[%s1 + $0x2c] sm:$0xf]
    %v72 = vld [vmem:[%s1 + $0x30] sm:$0xf]
    %v73 = vld [vmem:[%s1 + $0x34] sm:$0xf]
    %v74 = vld [vmem:[%s1 + $0x38] sm:$0xf]
    %v75 = vld [vmem:[%s1 + $0x3c] sm:$0xf]
    %v76 = vld [vmem:[%s2] sm:$0x1]
    %v78 = vlaneseq
    %v79 = vshrl.u32 %v78, 7
    %v80 = vsub.s32 0, %v79
    %v81 = vrot.slane %v76, %v80
    %v99 = vunpack.c.l.b16 %v44
    %v100 = vunpack.c.l.b16 %v45
    %v101 = vunpack.c.l.b16 %v46
    %v102 = vunpack.c.l.b16 %v47
    %v103 = vunpack.c.l.b16 %v48
    %v104 = vunpack.c.l.b16 %v49
    %v105 = vunpack.c.l.b16 %v50
    %v106 = vunpack.c.l.b16 %v51
    %v107 = vunpack.c.l.b16 %v52
    %v108 = vunpack.c.l.b16 %v53
    %v109 = vunpack.c.l.b16 %v54
    %v110 = vunpack.c.l.b16 %v55
    %v111 = vunpack.c.l.b16 %v56
    %v112 = vunpack.c.l.b16 %v57
    %v113 = vunpack.c.l.b16 %v58
    %v114 = vunpack.c.l.b16 %v59
    %v115 = vpack.c.b16 %v100, %v99
    %v116 = vpack.c.b16 %v102, %v101
    %v117 = vpack.c.b16 %v104, %v103
    %v118 = vpack.c.b16 %v106, %v105
    %v119 = vpack.c.b16 %v108, %v107
    %v120 = vpack.c.b16 %v110, %v109
    %v121 = vpack.c.b16 %v112, %v111
    %v122 = vpack.c.b16 %v114, %v113
    %v147 = vunpack.c.l.b16 %v60
    %v148 = vunpack.c.l.b16 %v61
    %v149 = vunpack.c.l.b16 %v62
    %v150 = vunpack.c.l.b16 %v63
    %v151 = vunpack.c.l.b16 %v64
    %v152 = vunpack.c.l.b16 %v65
    %v153 = vunpack.c.l.b16 %v66
    %v154 = vunpack.c.l.b16 %v67
    %v155 = vunpack.c.l.b16 %v68
    %v156 = vunpack.c.l.b16 %v69
    %v157 = vunpack.c.l.b16 %v70
    %v158 = vunpack.c.l.b16 %v71
    %v159 = vunpack.c.l.b16 %v72
    %v160 = vunpack.c.l.b16 %v73
    %v161 = vunpack.c.l.b16 %v74
    %v162 = vunpack.c.l.b16 %v75
    %v163 = vpack.c.b16 %v148, %v147
    %v164 = vpack.c.b16 %v150, %v149
    %v165 = vpack.c.b16 %v152, %v151
    %v166 = vpack.c.b16 %v154, %v153
    %v167 = vpack.c.b16 %v156, %v155
    %v168 = vpack.c.b16 %v158, %v157
    %v169 = vpack.c.b16 %v160, %v159
    %v170 = vpack.c.b16 %v162, %v161
    %179 = vmatprep.subr.bf16.mxu0 0
    %180 = vmatpush1.bf16.msra.mxu0 %v163
    %181 = vmatprep.subr.bf16.mxu0 0
    %182 = vmatpush1.bf16.msra.mxu0 %v164
    %183 = vmatprep.subr.bf16.mxu0 0
    %184 = vmatpush1.bf16.msra.mxu0 %v165
    %185 = vmatprep.subr.bf16.mxu0 0
    %186 = vmatpush1.bf16.msra.mxu0 %v166
    %187 = vmatprep.subr.bf16.mxu0 0
    %188 = vmatpush1.bf16.msra.mxu0 %v167
    %189 = vmatprep.subr.bf16.mxu0 0
    %190 = vmatpush1.bf16.msra.mxu0 %v168
    %191 = vmatprep.subr.bf16.mxu0 0
    %192 = vmatpush1.bf16.msra.mxu0 %v169
    %193 = vmatprep.subr.bf16.mxu0 0
    %194 = vmatpush1.bf16.msra.mxu0 %v170
    %195 = vmatprep.subr.bf16.mxu0 0
    %196 = vmatpush1.bf16.msra.mxu0 0
    %197 = vmatprep.subr.bf16.mxu0 0
    %198 = vmatpush1.bf16.msra.mxu0 0
    %199 = vmatprep.subr.bf16.mxu0 0
    %200 = vmatpush1.bf16.msra.mxu0 0
    %201 = vmatprep.subr.bf16.mxu0 0
    %202 = vmatpush1.bf16.msra.mxu0 0
    %203 = vmatprep.subr.bf16.mxu0 0
    %204 = vmatpush1.bf16.msra.mxu0 0
    %205 = vmatprep.subr.bf16.mxu0 0
    %206 = vmatpush1.bf16.msra.mxu0 0
    %207 = vmatprep.subr.bf16.mxu0 0
    %208 = vmatpush1.bf16.msra.mxu0 0
    %209 = vmatprep.subr.bf16.mxu0 0
    %210 = vmatpush1.bf16.msra.mxu0 0
    %211 = vmatprep.mubr.bf16.mxu0 0
    %212 = vmatmul.mubr.bf16.gmra.mrb[0].mxu0 %v115
    %v213 = vpop.f32.mrb[0].mxu0
    %v214 = vadd.f32 %v81, %v213
    %v215 = vpop.f32.mrb[0].mxu0
    %v216 = vpop.f32.mrb[0].mxu0
    %v217 = vadd.f32 %v81, %v216
    %v218 = vpop.f32.mrb[0].mxu0
    %219 = vmatprep.mubr.bf16.mxu0 0
    %220 = vmatmul.mubr.bf16.gmra.mrb[0].mxu0 %v116
    %v221 = vpop.f32.mrb[0].mxu0
    %v222 = vadd.f32 %v81, %v221
    %v223 = vpop.f32.mrb[0].mxu0
    %v224 = vpop.f32.mrb[0].mxu0
    %v225 = vadd.f32 %v81, %v224
    %v226 = vpop.f32.mrb[0].mxu0
    %227 = vmatprep.mubr.bf16.mxu0 0
    %228 = vmatmul.mubr.bf16.gmra.mrb[0].mxu0 %v117
    %v229 = vpop.f32.mrb[0].mxu0
    %v230 = vadd.f32 %v81, %v229
    %v231 = vpop.f32.mrb[0].mxu0
    %v232 = vpop.f32.mrb[0].mxu0
    %v233 = vadd.f32 %v81, %v232
    %v234 = vpop.f32.mrb[0].mxu0
    %235 = vmatprep.mubr.bf16.mxu0 0
    %236 = vmatmul.mubr.bf16.gmra.mrb[0].mxu0 %v118
    %v237 = vpop.f32.mrb[0].mxu0
    %v238 = vadd.f32 %v81, %v237
    %v239 = vpop.f32.mrb[0].mxu0
    %v240 = vpop.f32.mrb[0].mxu0
    %v241 = vadd.f32 %v81, %v240
    %v242 = vpop.f32.mrb[0].mxu0
    %243 = vmatprep.mubr.bf16.mxu0 0
    %244 = vmatmul.mubr.bf16.gmra.mrb[0].mxu0 %v119
    %v245 = vpop.f32.mrb[0].mxu0
    %v246 = vadd.f32 %v81, %v245
    %v247 = vpop.f32.mrb[0].mxu0
    %v248 = vpop.f32.mrb[0].mxu0
    %v249 = vadd.f32 %v81, %v248
    %v250 = vpop.f32.mrb[0].mxu0
    %251 = vmatprep.mubr.bf16.mxu0 0
    %252 = vmatmul.mubr.bf16.gmra.mrb[0].mxu0 %v120
    %v253 = vpop.f32.mrb[0].mxu0
    %v254 = vadd.f32 %v81, %v253
    %v255 = vpop.f32.mrb[0].mxu0
    %v256 = vpop.f32.mrb[0].mxu0
    %v257 = vadd.f32 %v81, %v256
    %v258 = vpop.f32.mrb[0].mxu0
    %259 = vmatprep.mubr.bf16.mxu0 0
    %260 = vmatmul.mubr.bf16.gmra.mrb[0].mxu0 %v121
    %v261 = vpop.f32.mrb[0].mxu0
    %v262 = vadd.f32 %v81, %v261
    %v263 = vpop.f32.mrb[0].mxu0
    %v264 = vpop.f32.mrb[0].mxu0
    %v265 = vadd.f32 %v81, %v264
    %v266 = vpop.f32.mrb[0].mxu0
    %267 = vmatprep.mubr.bf16.mxu0 0
    %268 = vmatmul.mubr.bf16.gmra.mrb[0].mxu0 %v122
    %v269 = vpop.f32.mrb[0].mxu0
    %v270 = vadd.f32 %v81, %v269
    %v271 = vpop.f32.mrb[0].mxu0
    %v272 = vpop.f32.mrb[0].mxu0
    %v273 = vadd.f32 %v81, %v272
    %v274 = vpop.f32.mrb[0].mxu0
    %275 = vdwg.mxu0
    %v276 = vmax.f32 %v214, 0.0
    %v277 = vmax.f32 %v217, 0.0
    %v278 = vmax.f32 %v222, 0.0
    %v279 = vmax.f32 %v225, 0.0
    %v280 = vmax.f32 %v230, 0.0
    %v281 = vmax.f32 %v233, 0.0
    %v282 = vmax.f32 %v238, 0.0
    %v283 = vmax.f32 %v241, 0.0
    %v284 = vmax.f32 %v246, 0.0
    %v285 = vmax.f32 %v249, 0.0
    %v286 = vmax.f32 %v254, 0.0
    %v287 = vmax.f32 %v257, 0.0
    %v288 = vmax.f32 %v262, 0.0
    %v289 = vmax.f32 %v265, 0.0
    %v290 = vmax.f32 %v270, 0.0
    %v291 = vmax.f32 %v273, 0.0
    %v292 = vpack.c.bf16 %v277, %v276
    %v293 = vpack.c.bf16 %v279, %v278
    %v294 = vpack.c.bf16 %v281, %v280
    %v295 = vpack.c.bf16 %v283, %v282
    %v296 = vpack.c.bf16 %v285, %v284
    %v297 = vpack.c.bf16 %v287, %v286
    %v298 = vpack.c.bf16 %v289, %v288
    %v299 = vpack.c.bf16 %v291, %v290
    %v300 = vld [vmem:[#allocation3] sm:$0xf]
    %v301 = vld [vmem:[#allocation3 + $0x4] sm:$0xf]
    %v302 = vld [vmem:[#allocation3 + $0x8] sm:$0xf]
    %v303 = vld [vmem:[#allocation3 + $0xc] sm:$0xf]
    %v304 = vld [vmem:[#allocation3 + $0x10] sm:$0xf]
    %v305 = vld [vmem:[#allocation3 + $0x14] sm:$0xf]
    %v306 = vld [vmem:[#allocation3 + $0x18] sm:$0xf]
    %v307 = vld [vmem:[#allocation3 + $0x1c] sm:$0xf]
    %v308 = vld [vmem:[#allocation3 + $0x20] sm:$0xf]
    %v309 = vld [vmem:[#allocation3 + $0x24] sm:$0xf]
    %v310 = vld [vmem:[#allocation3 + $0x28] sm:$0xf]
    %v311 = vld [vmem:[#allocation3 + $0x2c] sm:$0xf]
    %v312 = vld [vmem:[#allocation3 + $0x30] sm:$0xf]
    %v313 = vld [vmem:[#allocation3 + $0x34] sm:$0xf]
    %v314 = vld [vmem:[#allocation3 + $0x38] sm:$0xf]
    %v315 = vld [vmem:[#allocation3 + $0x3c] sm:$0xf]
    %v316 = vld [vmem:[%s4] sm:$0x1]
    %v318 = vlaneseq
    %v319 = vshrl.u32 %v318, 7
    %v320 = vsub.s32 0, %v319
    %v321 = vrot.slane %v316, %v320
    %v339 = vunpack.c.l.b16 %v300
    %v340 = vunpack.c.l.b16 %v301
    %v341 = vunpack.c.l.b16 %v302
    %v342 = vunpack.c.l.b16 %v303
    %v343 = vunpack.c.l.b16 %v304
    %v344 = vunpack.c.l.b16 %v305
    %v345 = vunpack.c.l.b16 %v306
    %v346 = vunpack.c.l.b16 %v307
    %v347 = vunpack.c.l.b16 %v308
    %v348 = vunpack.c.l.b16 %v309
    %v349 = vunpack.c.l.b16 %v310
    %v350 = vunpack.c.l.b16 %v311
    %v351 = vunpack.c.l.b16 %v312
    %v352 = vunpack.c.l.b16 %v313
    %v353 = vunpack.c.l.b16 %v314
    %v354 = vunpack.c.l.b16 %v315
    %v355 = vpack.c.b16 %v340, %v339
    %v356 = vpack.c.b16 %v342, %v341
    %v357 = vpack.c.b16 %v344, %v343
    %v358 = vpack.c.b16 %v346, %v345
    %v359 = vpack.c.b16 %v348, %v347
    %v360 = vpack.c.b16 %v350, %v349
    %v361 = vpack.c.b16 %v352, %v351
    %v362 = vpack.c.b16 %v354, %v353
    %371 = vmatprep.subr.bf16.mxu0 0
    %372 = vmatpush1.bf16.msra.mxu0 %v355
    %373 = vmatprep.subr.bf16.mxu0 0
    %374 = vmatpush1.bf16.msra.mxu0 %v356
    %375 = vmatprep.subr.bf16.mxu0 0
    %376 = vmatpush1.bf16.msra.mxu0 %v357
    %377 = vmatprep.subr.bf16.mxu0 0
    %378 = vmatpush1.bf16.msra.mxu0 %v358
    %379 = vmatprep.subr.bf16.mxu0 0
    %380 = vmatpush1.bf16.msra.mxu0 %v359
    %381 = vmatprep.subr.bf16.mxu0 0
    %382 = vmatpush1.bf16.msra.mxu0 %v360
    %383 = vmatprep.subr.bf16.mxu0 0
    %384 = vmatpush1.bf16.msra.mxu0 %v361
    %385 = vmatprep.subr.bf16.mxu0 0
    %386 = vmatpush1.bf16.msra.mxu0 %v362
    %387 = vmatprep.subr.bf16.mxu0 0
    %388 = vmatpush1.bf16.msra.mxu0 0
    %389 = vmatprep.subr.bf16.mxu0 0
    %390 = vmatpush1.bf16.msra.mxu0 0
    %391 = vmatprep.subr.bf16.mxu0 0
    %392 = vmatpush1.bf16.msra.mxu0 0
    %393 = vmatprep.subr.bf16.mxu0 0
    %394 = vmatpush1.bf16.msra.mxu0 0
    %395 = vmatprep.subr.bf16.mxu0 0
    %396 = vmatpush1.bf16.msra.mxu0 0
    %397 = vmatprep.subr.bf16.mxu0 0
    %398 = vmatpush1.bf16.msra.mxu0 0
    %399 = vmatprep.subr.bf16.mxu0 0
    %400 = vmatpush1.bf16.msra.mxu0 0
    %401 = vmatprep.subr.bf16.mxu0 0
    %402 = vmatpush1.bf16.msra.mxu0 0
    %403 = vmatprep.mubr.bf16.mxu0 0
    %404 = vmatmul.mubr.bf16.gmra.mrb[0].mxu0 %v292
    %v405 = vpop.f32.mrb[0].mxu0
    %v406 = vadd.f32 %v321, %v405
    %v407 = vpop.f32.mrb[0].mxu0
    %v408 = vpop.f32.mrb[0].mxu0
    %v409 = vadd.f32 %v321, %v408
    %v410 = vpop.f32.mrb[0].mxu0
    %411 = vmatprep.mubr.bf16.mxu0 0
    %412 = vmatmul.mubr.bf16.gmra.mrb[0].mxu0 %v293
    %v413 = vpop.f32.mrb[0].mxu0
    %v414 = vadd.f32 %v321, %v413
    %v415 = vpop.f32.mrb[0].mxu0
    %v416 = vpop.f32.mrb[0].mxu0
    %v417 = vadd.f32 %v321, %v416
    %v418 = vpop.f32.mrb[0].mxu0
    %419 = vmatprep.mubr.bf16.mxu0 0
    %420 = vmatmul.mubr.bf16.gmra.mrb[0].mxu0 %v294
    %v421 = vpop.f32.mrb[0].mxu0
    %v422 = vadd.f32 %v321, %v421
    %v423 = vpop.f32.mrb[0].mxu0
    %v424 = vpop.f32.mrb[0].mxu0
    %v425 = vadd.f32 %v321, %v424
    %v426 = vpop.f32.mrb[0].mxu0
    %427 = vmatprep.mubr.bf16.mxu0 0
    %428 = vmatmul.mubr.bf16.gmra.mrb[0].mxu0 %v295
    %v429 = vpop.f32.mrb[0].mxu0
    %v430 = vadd.f32 %v321, %v429
    %v431 = vpop.f32.mrb[0].mxu0
    %v432 = vpop.f32.mrb[0].mxu0
    %v433 = vadd.f32 %v321, %v432
    %v434 = vpop.f32.mrb[0].mxu0
    %435 = vmatprep.mubr.bf16.mxu0 0
    %436 = vmatmul.mubr.bf16.gmra.mrb[0].mxu0 %v296
    %v437 = vpop.f32.mrb[0].mxu0
    %v438 = vadd.f32 %v321, %v437
    %v439 = vpop.f32.mrb[0].mxu0
    %v440 = vpop.f32.mrb[0].mxu0
    %v441 = vadd.f32 %v321, %v440
    %v442 = vpop.f32.mrb[0].mxu0
    %443 = vmatprep.mubr.bf16.mxu0 0
    %444 = vmatmul.mubr.bf16.gmra.mrb[0].mxu0 %v297
    %v445 = vpop.f32.mrb[0].mxu0
    %v446 = vadd.f32 %v321, %v445
    %v447 = vpop.f32.mrb[0].mxu0
    %v448 = vpop.f32.mrb[0].mxu0
    %v449 = vadd.f32 %v321, %v448
    %v450 = vpop.f32.mrb[0].mxu0
    %451 = vmatprep.mubr.bf16.mxu0 0
    %452 = vmatmul.mubr.bf16.gmra.mrb[0].mxu0 %v298
    %v453 = vpop.f32.mrb[0].mxu0
    %v454 = vadd.f32 %v321, %v453
    %v455 = vpop.f32.mrb[0].mxu0
    %v456 = vpop.f32.mrb[0].mxu0
    %v457 = vadd.f32 %v321, %v456
    %v458 = vpop.f32.mrb[0].mxu0
    %459 = vmatprep.mubr.bf16.mxu0 0
    %460 = vmatmul.mubr.bf16.gmra.mrb[0].mxu0 %v299
    %v461 = vpop.f32.mrb[0].mxu0
    %v462 = vadd.f32 %v321, %v461
    %v463 = vpop.f32.mrb[0].mxu0
    %v464 = vpop.f32.mrb[0].mxu0
    %v465 = vadd.f32 %v321, %v464
    %v466 = vpop.f32.mrb[0].mxu0
    %467 = vdwg.mxu0
    %v468 = vmax.f32 %v406, 0.0
    %v469 = vmax.f32 %v409, 0.0
    %v470 = vmax.f32 %v414, 0.0
    %v471 = vmax.f32 %v417, 0.0
    %v472 = vmax.f32 %v422, 0.0
    %v473 = vmax.f32 %v425, 0.0
    %v474 = vmax.f32 %v430, 0.0
    %v475 = vmax.f32 %v433, 0.0
    %v476 = vmax.f32 %v438, 0.0
    %v477 = vmax.f32 %v441, 0.0
    %v478 = vmax.f32 %v446, 0.0
    %v479 = vmax.f32 %v449, 0.0
    %v480 = vmax.f32 %v454, 0.0
    %v481 = vmax.f32 %v457, 0.0
    %v482 = vmax.f32 %v462, 0.0
    %v483 = vmax.f32 %v465, 0.0
    %484 = vxpose.xlu0.b32.start [1/16] %v468, 128
    %485 = vxpose.xlu0.b32.cont [2/16] %v469, 128
    %486 = vxpose.xlu0.b32.cont [3/16] %v470, 128
    %487 = vxpose.xlu0.b32.cont [4/16] %v471, 128
    %488 = vxpose.xlu0.b32.cont [5/16] %v472, 128
    %489 = vxpose.xlu0.b32.cont [6/16] %v473, 128
    %490 = vxpose.xlu0.b32.cont [7/16] %v474, 128
    %491 = vxpose.xlu0.b32.cont [8/16] %v475, 128
    %492 = vxpose.xlu0.b32.cont [9/16] %v476, 128
    %493 = vxpose.xlu0.b32.cont [10/16] %v477, 128
    %494 = vxpose.xlu0.b32.cont [11/16] %v478, 128
    %495 = vxpose.xlu0.b32.cont [12/16] %v479, 128
    %496 = vxpose.xlu0.b32.cont [13/16] %v480, 128
    %497 = vxpose.xlu0.b32.cont [14/16] %v481, 128
    %498 = vxpose.xlu0.b32.cont [15/16] %v482, 128
    %499 = vxpose.xlu0.b32.end [16/16] %v483, 128
    %v500 = vpop.trf.xlu0
    %v501 = vpop.trf.xlu0
    %v502 = vpop.trf.xlu0
    %v503 = vpop.trf.xlu0
    %v504 = vpop.trf.xlu0
    %v505 = vpop.trf.xlu0
    %v506 = vpop.trf.xlu0
    %v507 = vpop.trf.xlu0
    %v508 = vpop.trf.xlu0
    %v509 = vpop.trf.xlu0
    %v510 = vpop.trf.xlu0
    %v511 = vpop.trf.xlu0
    %v512 = vpop.trf.xlu0
    %v513 = vpop.trf.xlu0
    %v514 = vpop.trf.xlu0
    %v515 = vpop.trf.xlu0
    %v516 = vld [vmem:[%s5] sm:$0xff]
    %v517 = vld [vmem:[%s5 + $0x8] sm:$0xff]
    %v518 = vld [vmem:[%s5 + $0x10] sm:$0xff]
    %v519 = vld [vmem:[%s5 + $0x18] sm:$0xff]
    %v520 = vld [vmem:[%s5 + $0x20] sm:$0xff]
    %v521 = vld [vmem:[%s5 + $0x28] sm:$0xff]
    %v522 = vld [vmem:[%s5 + $0x30] sm:$0xff]
    %v523 = vld [vmem:[%s5 + $0x38] sm:$0xff]
    %v524 = vld [vmem:[%s5 + $0x40] sm:$0xff]
    %v525 = vld [vmem:[%s5 + $0x48] sm:$0xff]
    %v526 = vld [vmem:[%s5 + $0x50] sm:$0xff]
    %v527 = vld [vmem:[%s5 + $0x58] sm:$0xff]
    %v528 = vld [vmem:[%s5 + $0x60] sm:$0xff]
    %v529 = vld [vmem:[%s5 + $0x68] sm:$0xff]
    %v530 = vld [vmem:[%s5 + $0x70] sm:$0xff]
    %v531 = vld [vmem:[%s5 + $0x78] sm:$0xff]
    %533 = vset.pattern.permute.xlu0 0
    %534 = vperm.xlu0 %533, %v516
    %v535 = vpop.permute.xlu0 %534
    %538 = vset.pattern.permute.xlu0 0
    %539 = vperm.xlu0 %538, %v517
    %v540 = vpop.permute.xlu0 %539
    %543 = vset.pattern.permute.xlu0 0
    %544 = vperm.xlu0 %543, %v518
    %v545 = vpop.permute.xlu0 %544
    %548 = vset.pattern.permute.xlu0 0
    %549 = vperm.xlu0 %548, %v519
    %v550 = vpop.permute.xlu0 %549
    %553 = vset.pattern.permute.xlu0 0
    %554 = vperm.xlu0 %553, %v520
    %v555 = vpop.permute.xlu0 %554
    %558 = vset.pattern.permute.xlu0 0
    %559 = vperm.xlu0 %558, %v521
    %v560 = vpop.permute.xlu0 %559
    %563 = vset.pattern.permute.xlu0 0
    %564 = vperm.xlu0 %563, %v522
    %v565 = vpop.permute.xlu0 %564
    %568 = vset.pattern.permute.xlu0 0
    %569 = vperm.xlu0 %568, %v523
    %v570 = vpop.permute.xlu0 %569
    %573 = vset.pattern.permute.xlu0 0
    %574 = vperm.xlu0 %573, %v524
    %v575 = vpop.permute.xlu0 %574
    %578 = vset.pattern.permute.xlu0 0
    %579 = vperm.xlu0 %578, %v525
    %v580 = vpop.permute.xlu0 %579
    %583 = vset.pattern.permute.xlu0 0
    %584 = vperm.xlu0 %583, %v526
    %v585 = vpop.permute.xlu0 %584
    %588 = vset.pattern.permute.xlu0 0
    %589 = vperm.xlu0 %588, %v527
    %v590 = vpop.permute.xlu0 %589
    %593 = vset.pattern.permute.xlu0 0
    %594 = vperm.xlu0 %593, %v528
    %v595 = vpop.permute.xlu0 %594
    %598 = vset.pattern.permute.xlu0 0
    %599 = vperm.xlu0 %598, %v529
    %v600 = vpop.permute.xlu0 %599
    %603 = vset.pattern.permute.xlu0 0
    %604 = vperm.xlu0 %603, %v530
    %v605 = vpop.permute.xlu0 %604
    %608 = vset.pattern.permute.xlu0 0
    %609 = vperm.xlu0 %608, %v531
    %v610 = vpop.permute.xlu0 %609
    %v612 = vmul.f32 %v500, %v535
    %v613 = vmul.f32 %v501, %v540
    %v614 = vmul.f32 %v502, %v545
    %v615 = vmul.f32 %v503, %v550
    %v616 = vmul.f32 %v504, %v555
    %v617 = vmul.f32 %v505, %v560
    %v618 = vmul.f32 %v506, %v565
    %v619 = vmul.f32 %v507, %v570
    %v620 = vmul.f32 %v508, %v575
    %v621 = vmul.f32 %v509, %v580
    %v622 = vmul.f32 %v510, %v585
    %v623 = vmul.f32 %v511, %v590
    %v624 = vmul.f32 %v512, %v595
    %v625 = vmul.f32 %v513, %v600
    %v626 = vmul.f32 %v514, %v605
    %v627 = vmul.f32 %v515, %v610
    %v628 = vadd.f32 %v612, %v613
    %v629 = vadd.f32 %v628, %v614
    %v630 = vadd.f32 %v629, %v615
    %v631 = vadd.f32 %v630, %v616
    %v632 = vadd.f32 %v631, %v617
    %v633 = vadd.f32 %v632, %v618
    %v634 = vadd.f32 %v633, %v619
    %v635 = vadd.f32 %v634, %v620
    %v636 = vadd.f32 %v635, %v621
    %v637 = vadd.f32 %v636, %v622
    %v638 = vadd.f32 %v637, %v623
    %v639 = vadd.f32 %v638, %v624
    %v640 = vadd.f32 %v639, %v625
    %v641 = vadd.f32 %v640, %v626
    %v642 = vadd.f32 %v641, %v627
    %v643 = vrot.slane %v642, 4
    %v644 = vadd.f32 %v642, %v643
    %v645 = vrot.slane %v644, 2
    %v646 = vadd.f32 %v644, %v645
    %v647 = vrot.slane %v646, 1
    %v648 = vadd.f32 %v646, %v647
    %v649 = vld [vmem:[#allocation2] sm:$0x1]
    %651 = vset.pattern.permute.xlu0 0
    %652 = vperm.xlu0 %651, %v649
    %v653 = vpop.permute.xlu0 %652
    %v655 = vlaneseq
    %v656 = vshrl.u32 %v655, 7
    %v657 = vsub.s32 0, %v656
    %v658 = vrot.slane %v653, %v657
    %v659 = vadd.f32 %v648, %v658
    %v660 = vxor.u32 %v659, 2147483648
    %v661 = vmul.f32 %v660, 1.442695
    %v662 = vpow.pop %v661
    %v663 = vadd.f32 %v662, 1.0
    %v664 = vrcp.pop %v663
    %v665 = vmul.f32 1.0, %v664
    %666 = vst [vmem:[#allocation6] sm:$0x1] %v665
    // Predicated region
    $region34: #{tpu_custom_call.1} parent=1 // pred_check
      _
    $region35: #{tpu_custom_call.1} parent=1 // pred_check_branch
      %668 = sbr.rel (0) target = $region37
    $region36: #{tpu_custom_call.1} parent=1 // pred_region
      %s670 = ssub.s32 16, 16
      %671 = vsyncadd [#allocation5], %s670
      %s673 = sshll.u32 [#allocation6], 4
      %s674 = int_to_ptr.vmem [resolvable:$true] %s673
      %676 = dma.vmem_to_hbm [thread:$0]  %s674, 16, %s7, [#allocation5]
    $region37: #{tpu_custom_call.1} parent=1 // pred_fallthru
      _
    // Predicated region
    $region38: #{tpu_custom_call.1} parent=1 // pred_check
      _
    $region39: #{tpu_custom_call.1} parent=1 // pred_check_branch
      %678 = sbr.rel (0) target = $region41
    $region40: #{tpu_custom_call.1} parent=1 // pred_region
      %679 = dma.done [#allocation5], 16
    $region41: #{tpu_custom_call.1} parent=1 // pred_fallthru
      _
    %680 = vsyncpa [#allocation4], 1
    %681 = vsyncpa [#allocation5], 1

</llo_original>
